<compile_context>
chip_gen: v6e
topology: v6e:2x2x1
jax: 0.10.0
libtpu: 0.0.40
codegen_flags: <defaults>
</compile_context>

<pallas_src>
import jax
import jax.numpy as jnp
from jax.experimental import pallas as pl
from jax.experimental.pallas import tpu as pltpu


def _siamese_kernel(x_ref, w1_ref, b1_ref, w2_ref, b2_ref, o_ref):
    # Fused: out = relu(x @ W1 + b1) @ W2 + b2
    # x/W1/W2 are bf16 (MXU native), accumulate + bias + ReLU in f32.
    x = x_ref[...]                                            # (TILE_M, D_in) bf16
    h = jnp.dot(x, w1_ref[...], preferred_element_type=jnp.float32)
    h = jnp.maximum(h + b1_ref[...], 0.0)                     # f32 VPU
    o = jnp.dot(h.astype(jnp.bfloat16), w2_ref[...],
                preferred_element_type=jnp.float32)
    o_ref[...] = (o + b2_ref[...]).astype(o_ref.dtype)        # dense 128-lane store


def siamese_net(x1, x2, params):
    """SiameseNet.forward: shared-weight embedding of both inputs, one kernel."""
    w1, b1, w2, b2 = params
    B = x1.shape[0]
    D_in, H = w1.shape
    E = w2.shape[1]

    # Row tile per branch: >=16 rows keeps bf16 sublanes dense.
    TILE_M = max(16, ((B + 15) // 16) * 16)
    E_pad = ((E + 127) // 128) * 128          # lane-dense output slab

    # Flatten exactly like torch x.view(B, -1); cast matmul operands to bf16.
    x1f = x1.reshape(B, -1).astype(jnp.bfloat16)
    x2f = x2.reshape(B, -1).astype(jnp.bfloat16)
    pad = TILE_M - B
    x_stacked = jnp.concatenate(
        [jnp.pad(x1f, ((0, pad), (0, 0))),
         jnp.pad(x2f, ((0, pad), (0, 0)))], axis=0)           # (2*TILE_M, D_in)

    w1_bf = w1.astype(jnp.bfloat16)                           # (D_in, H)
    w2_pad = jnp.pad(w2, ((0, 0), (0, E_pad - E))).astype(jnp.bfloat16)  # (H, E_pad)
    b2_pad = jnp.pad(b2, ((0, 0), (0, E_pad - E)))            # (1, E_pad) f32

    out = pl.pallas_call(
        _siamese_kernel,
        out_shape=jax.ShapeDtypeStruct((2 * TILE_M, E_pad), jnp.float32),
        grid_spec=pl.GridSpec(
            grid=(2,),                                        # one branch per step
            in_specs=[
                pl.BlockSpec((TILE_M, D_in), lambda i: (i, 0)),   # per-branch rows
                pl.BlockSpec((D_in, H), lambda i: (0, 0)),        # W1 resident
                pl.BlockSpec((1, H), lambda i: (0, 0)),           # b1 resident
                pl.BlockSpec((H, E_pad), lambda i: (0, 0)),       # W2 resident
                pl.BlockSpec((1, E_pad), lambda i: (0, 0)),       # b2 resident
            ],
            out_specs=pl.BlockSpec((TILE_M, E_pad), lambda i: (i, 0)),
        ),
        compiler_params=pltpu.CompilerParams(
            dimension_semantics=("parallel",)),                # v7x: branch per TC
    )(x_stacked, w1_bf, b1, w2_pad, b2_pad)

    out1 = out[:B, :E]
    out2 = out[TILE_M:TILE_M + B, :E]
    return out1, out2


def init_params(key, d_in, hidden, emb):
    k1, k2 = jax.random.split(key)
    w1 = jax.random.normal(k1, (d_in, hidden), jnp.float32) * (1.0 / d_in ** 0.5)
    b1 = jnp.zeros((1, hidden), jnp.float32)
    w2 = jax.random.normal(k2, (hidden, emb), jnp.float32) * (1.0 / hidden ** 0.5)
    b2 = jnp.zeros((1, emb), jnp.float32)
    return (w1, b1, w2, b2)


if __name__ == "__main__":
    key = jax.random.PRNGKey(0)
    kx1, kx2, kp = jax.random.split(key, 3)

    B, C, Hs, Ws = 2, 4, 16, 16        # NCHW inputs (small, synthetic)
    HIDDEN, EMB = 128, 32

    x1 = jax.random.normal(kx1, (B, C, Hs, Ws), jnp.float32)
    x2 = jax.random.normal(kx2, (B, C, Hs, Ws), jnp.float32)
    params = init_params(kp, C * Hs * Ws, HIDDEN, EMB)

    out1, out2 = siamese_net(x1, x2, params)
    jax.block_until_ready((out1, out2))

    # Pure-JAX reference with the same bf16 operand casts / f32 accumulation.
    def ref_embed(x):
        xf = x.reshape(B, -1).astype(jnp.bfloat16)
        w1_bf = params[0].astype(jnp.bfloat16)
        w2_bf = params[2].astype(jnp.bfloat16)
        h = jnp.maximum(
            jnp.dot(xf, w1_bf, preferred_element_type=jnp.float32) + params[1], 0.0)
        return jnp.dot(h.astype(jnp.bfloat16), w2_bf,
                       preferred_element_type=jnp.float32) + params[3]

    r1, r2 = ref_embed(x1), ref_embed(x2)
    assert out1.shape == (B, EMB) and out2.shape == (B, EMB)
    assert jnp.allclose(out1, r1, atol=1e-2, rtol=1e-2)
    assert jnp.allclose(out2, r2, atol=1e-2, rtol=1e-2)

    print("KERNEL_OK")
</pallas_src>

<mosaic_0001>
module attributes {stable_mosaic.version = 11 : i64} {
  func.func @_siamese_kernel(%arg0: i32, %arg1: memref<16x1024xbf16, #tpu.memory_space<vmem>>, %arg2: memref<1024x128xbf16, #tpu.memory_space<vmem>>, %arg3: memref<1x128xf32, #tpu.memory_space<vmem>>, %arg4: memref<128x128xbf16, #tpu.memory_space<vmem>>, %arg5: memref<1x128xf32, #tpu.memory_space<vmem>>, %arg6: memref<16x128xf32, #tpu.memory_space<vmem>>) attributes {dimension_semantics = [#tpu.dimension_semantics<parallel>], iteration_bounds = array<i64: 2>, scalar_prefetch = 0 : i64, scratch_operands = 0 : i64, tpu.core_type = #tpu.core_type<tc>, window_params = [{transform_indices = @transform_0, window_bounds = array<i64: 16, 1024>}, {pipeline_mode = #tpu.pipeline_mode<synchronous>, transform_indices = @transform_1, window_bounds = array<i64: 1024, 128>}, {pipeline_mode = #tpu.pipeline_mode<synchronous>, transform_indices = @transform_2, window_bounds = array<i64: 1, 128>}, {pipeline_mode = #tpu.pipeline_mode<synchronous>, transform_indices = @transform_3, window_bounds = array<i64: 128, 128>}, {pipeline_mode = #tpu.pipeline_mode<synchronous>, transform_indices = @transform_4, window_bounds = array<i64: 1, 128>}, {transform_indices = @transform_5, window_bounds = array<i64: 16, 128>}]} {
    %c0 = arith.constant 0 : index
    %c0_0 = arith.constant 0 : index
    %0 = vector.load %arg1[%c0, %c0_0] : memref<16x1024xbf16, #tpu.memory_space<vmem>>, vector<16x1024xbf16>
    %c0_1 = arith.constant 0 : index
    %c0_2 = arith.constant 0 : index
    %1 = vector.load %arg2[%c0_1, %c0_2] : memref<1024x128xbf16, #tpu.memory_space<vmem>>, vector<1024x128xbf16>
    %cst = arith.constant dense<0.000000e+00> : vector<16x128xf32>
    %2 = tpu.matmul %0, %1, %cst {dimension_numbers = #tpu.dot_dimension_numbers<[1], [0], [0], [1], [0, 0, 1, 1], [], []>} : vector<16x1024xbf16>, vector<1024x128xbf16>, vector<16x128xf32> -> vector<16x128xf32>
    %c0_3 = arith.constant 0 : index
    %c0_4 = arith.constant 0 : index
    %3 = vector.load %arg3[%c0_3, %c0_4] : memref<1x128xf32, #tpu.memory_space<vmem>>, vector<1x128xf32>
    %4 = vector.broadcast %3 : vector<1x128xf32> to vector<16x128xf32>
    %5 = arith.addf %2, %4 : vector<16x128xf32>
    %cst_5 = arith.constant 0.000000e+00 : f32
    %6 = vector.broadcast %cst_5 : f32 to vector<16x128xf32>
    %7 = arith.maximumf %5, %6 : vector<16x128xf32>
    %8 = arith.truncf %7 : vector<16x128xf32> to vector<16x128xbf16>
    %c0_6 = arith.constant 0 : index
    %c0_7 = arith.constant 0 : index
    %9 = vector.load %arg4[%c0_6, %c0_7] : memref<128x128xbf16, #tpu.memory_space<vmem>>, vector<128x128xbf16>
    %cst_8 = arith.constant dense<0.000000e+00> : vector<16x128xf32>
    %10 = tpu.matmul %8, %9, %cst_8 {dimension_numbers = #tpu.dot_dimension_numbers<[1], [0], [0], [1], [0, 0, 1, 1], [], []>} : vector<16x128xbf16>, vector<128x128xbf16>, vector<16x128xf32> -> vector<16x128xf32>
    %c0_9 = arith.constant 0 : index
    %c0_10 = arith.constant 0 : index
    %11 = vector.load %arg5[%c0_9, %c0_10] : memref<1x128xf32, #tpu.memory_space<vmem>>, vector<1x128xf32>
    %12 = vector.broadcast %11 : vector<1x128xf32> to vector<16x128xf32>
    %13 = arith.addf %10, %12 : vector<16x128xf32>
    %c0_11 = arith.constant 0 : index
    %c0_12 = arith.constant 0 : index
    %14 = vector.load %arg6[%c0_11, %c0_12] : memref<16x128xf32, #tpu.memory_space<vmem>>, vector<16x128xf32>
    tpu.vector_store %arg6[%c0_11, %c0_12], %13 {strides = array<i32>} : memref<16x128xf32, #tpu.memory_space<vmem>>, vector<16x128xf32>,
    return
  }
  func.func @transform_0(%arg0: i32) -> (i32, i32) {
    %c0_i32 = arith.constant 0 : i32
    %c0_i32_0 = arith.constant 0 : i32
    return %arg0, %c0_i32 : i32, i32
  }
  func.func @transform_1(%arg0: i32) -> (i32, i32) {
    %c0_i32 = arith.constant 0 : i32
    %c0_i32_0 = arith.constant 0 : i32
    %c0_i32_1 = arith.constant 0 : i32
    return %c0_i32, %c0_i32_0 : i32, i32
  }
  func.func @transform_2(%arg0: i32) -> (i32, i32) {
    %c0_i32 = arith.constant 0 : i32
    %c0_i32_0 = arith.constant 0 : i32
    %c0_i32_1 = arith.constant 0 : i32
    return %c0_i32, %c0_i32_0 : i32, i32
  }
  func.func @transform_3(%arg0: i32) -> (i32, i32) {
    %c0_i32 = arith.constant 0 : i32
    %c0_i32_0 = arith.constant 0 : i32
    %c0_i32_1 = arith.constant 0 : i32
    return %c0_i32, %c0_i32_0 : i32, i32
  }
  func.func @transform_4(%arg0: i32) -> (i32, i32) {
    %c0_i32 = arith.constant 0 : i32
    %c0_i32_0 = arith.constant 0 : i32
    %c0_i32_1 = arith.constant 0 : i32
    return %c0_i32, %c0_i32_0 : i32, i32
  }
  func.func @transform_5(%arg0: i32) -> (i32, i32) {
    %c0_i32 = arith.constant 0 : i32
    %c0_i32_0 = arith.constant 0 : i32
    return %arg0, %c0_i32 : i32, i32
  }
}

</mosaic_0001>

<llo_original>
// kernel: tpu_custom_call.1
$region0: #{tpu_custom_call.1}
  #allocation0 [shape = 'u32[]', space=smem, size = 0x4, offset = 0x4, fixed_abs, tag = 'smem constant byte address 0x4 - core index']
  #allocation1 [shape = 'u32[144,128]{1,0:T(1,128)}', space=vmem, size = 0x12000, scoped, tag = 'internal scratch']
  %s0 = inlined_call_operand.hbm [shape: bf16[32,1024], index: 0, kind: input, shape index: {}]
  %s1 = inlined_call_operand.hbm [shape: bf16[1024,128], index: 1, kind: input, shape index: {}]
  %s2 = inlined_call_operand.vmem [shape: f32[1,128], index: 2, kind: input, shape index: {}]
  %s3 = inlined_call_operand.hbm [shape: bf16[128,128], index: 3, kind: input, shape index: {}]
  %s4 = inlined_call_operand.vmem [shape: f32[1,128], index: 4, kind: input, shape index: {}]
  %s5 = inlined_call_operand.hbm [shape: f32[32,128], index: 5, kind: output, shape index: {}]
  %s6 = sld [smem:[#allocation0]]
  $region65: #{tpu_custom_call.1} parent=0
    _
  %s8 = ssub.s32 1, %s6
  %s9 = scalar_select 0, %s8, %s6
  $region1: #{tpu_custom_call.1} parent=0
    #allocation2 [shape = 'u8[65536]{0}', space=vmem, size = 0x10000, scoped, tag = 'input window, operand 0']
    #allocation3 [shape = 's32[2]{0}', space=sflag, size = 0x8, scoped, tag = 'scoped memory for tpu_custom_call.1']
    #allocation4 [shape = 's32[2]{0}', space=sflag, size = 0x8, scoped, tag = 'scoped memory for tpu_custom_call.1']
    #allocation5 [shape = 'u8[262144]{0}', space=vmem, size = 0x40000, scoped, tag = 'input window, operand 1, single buffered']
    #allocation6 [shape = 's32[1]{0}', space=sflag, size = 0x4, scoped, tag = 'scoped memory for tpu_custom_call.1']
    #allocation7 [shape = 'u8[32768]{0}', space=vmem, size = 0x8000, scoped, tag = 'input window, operand 3, single buffered']
    #allocation8 [shape = 'u8[16384]{0}', space=vmem, size = 0x4000, scoped, tag = 'output window, operand 0']
    %10 = vsyncpa [#allocation3], 0
    %s11 = scalar_lea.sflag [#allocation3], 1
    %12 = vsyncpa %s11, 0
    %13 = vsyncpa [#allocation6], 0
    %14 = vsyncpa [#allocation4], 0
    %s15 = scalar_lea.sflag [#allocation4], 1
    %16 = vsyncpa %s15, 0
    loop: start=0, step=1, limit=4
    $region2: #{tpu_custom_call.1} parent=1 // loop_pre_header
      _
    $region3: #{tpu_custom_call.1} parent=1 // loop_header
      %s18 = sphi 0, %s22
      %p19 = scmp.ge.s32.totalorder %s18, 4
      %s28 = sphi 0, %s30
      %s31 = sphi 0, %s28
      %s32 = sphi 0, %s31
      %s48 = sphi 0, %s32
      %s52 = sphi 0, %s52
      %s54 = sphi 0, %s52
      %s55 = sphi 0, %s54
      %s69 = sphi 0, %s55
      %s73 = sphi 0, %s73
      %s75 = sphi 0, %s73
      %s76 = sphi 0, %s75
      %s90 = sphi 0, %s76
      %s94 = sphi 0, %s94
      %s96 = sphi 0, %s94
      %s97 = sphi 0, %s96
      %s111 = sphi 0, %s97
      %s115 = sphi 0, %s115
      %s117 = sphi 0, %s115
      %s118 = sphi 0, %s117
      %s132 = sphi 0, %s118
      %s138 = sphi 0, %s140
      %s141 = sphi 0, %s138
      %s142 = sphi 0, %s141
      %s158 = sphi 0, %s142
    $region4: #{tpu_custom_call.1} parent=1 // loop_header_branch
      %21 = sbr.rel (%p19) target = $region8
    $region5: #{tpu_custom_call.1} parent=1 // loop_body
      %s23 = ssub.s32 %s18, 1
      %s24 = ssub.s32 %s18, 2
      %s25 = sadd.s32 %s18, 1
      %s26 = ssub.s32 %s18, %s25
      %p27 = scmp.eq.s32.totalorder %s26, 0
      %s29 = sadd.s32 %s28, 1
      %s30 = scalar_select %p27, %s28, %s29
      %p33 = pneg %p27
      %p34 = scmp.eq.s32.totalorder %s18, 1
      %p35 = por %p33, %p34
      %p36 = scmp.ne.s32.totalorder %s28, %s31
      %p37 = scmp.eq.s32.totalorder %s18, 0
      %p38 = por %p36, %p37
      %p39 = scmp.ne.s32.totalorder %s28, %s31
      %p40 = scmp.eq.s32.totalorder %s23, 1
      %p41 = por %p39, %p40
      %p42 = scmp.ne.s32.totalorder %s31, %s32
      %p43 = scmp.eq.s32.totalorder %s23, 0
      %p44 = por %p42, %p43
      %p45 = scmp.ne.s32.totalorder %s31, %s32
      %p46 = scmp.eq.s32.totalorder %s24, 1
      %p47 = por %p45, %p46
      %p49 = scmp.ne.s32.totalorder %s32, %s48
      %p50 = scmp.eq.s32.totalorder %s24, 0
      %p51 = por %p49, %p50
      %s53 = sadd.s32 %s52, 1
      %p56 = scmp.eq.s32.totalorder %s18, 1
      %p57 = scmp.ne.s32.totalorder %s52, %s54
      %p58 = scmp.eq.s32.totalorder %s18, 0
      %p59 = por %p57, %p58
      %p60 = scmp.ne.s32.totalorder %s52, %s54
      %p61 = scmp.eq.s32.totalorder %s23, 1
      %p62 = por %p60, %p61
      %p63 = scmp.ne.s32.totalorder %s54, %s55
      %p64 = scmp.eq.s32.totalorder %s23, 0
      %p65 = por %p63, %p64
      %p66 = scmp.ne.s32.totalorder %s54, %s55
      %p67 = scmp.eq.s32.totalorder %s24, 1
      %p68 = por %p66, %p67
      %p70 = scmp.ne.s32.totalorder %s55, %s69
      %p71 = scmp.eq.s32.totalorder %s24, 0
      %p72 = por %p70, %p71
      %s74 = sadd.s32 %s73, 1
      %p77 = scmp.eq.s32.totalorder %s18, 1
      %p78 = scmp.ne.s32.totalorder %s73, %s75
      %p79 = scmp.eq.s32.totalorder %s18, 0
      %p80 = por %p78, %p79
      %p81 = scmp.ne.s32.totalorder %s73, %s75
      %p82 = scmp.eq.s32.totalorder %s23, 1
      %p83 = por %p81, %p82
      %p84 = scmp.ne.s32.totalorder %s75, %s76
      %p85 = scmp.eq.s32.totalorder %s23, 0
      %p86 = por %p84, %p85
      %p87 = scmp.ne.s32.totalorder %s75, %s76
      %p88 = scmp.eq.s32.totalorder %s24, 1
      %p89 = por %p87, %p88
      %p91 = scmp.ne.s32.totalorder %s76, %s90
      %p92 = scmp.eq.s32.totalorder %s24, 0
      %p93 = por %p91, %p92
      %s95 = sadd.s32 %s94, 1
      %p98 = scmp.eq.s32.totalorder %s18, 1
      %p99 = scmp.ne.s32.totalorder %s94, %s96
      %p100 = scmp.eq.s32.totalorder %s18, 0
      %p101 = por %p99, %p100
      %p102 = scmp.ne.s32.totalorder %s94, %s96
      %p103 = scmp.eq.s32.totalorder %s23, 1
      %p104 = por %p102, %p103
      %p105 = scmp.ne.s32.totalorder %s96, %s97
      %p106 = scmp.eq.s32.totalorder %s23, 0
      %p107 = por %p105, %p106
      %p108 = scmp.ne.s32.totalorder %s96, %s97
      %p109 = scmp.eq.s32.totalorder %s24, 1
      %p110 = por %p108, %p109
      %p112 = scmp.ne.s32.totalorder %s97, %s111
      %p113 = scmp.eq.s32.totalorder %s24, 0
      %p114 = por %p112, %p113
      %s116 = sadd.s32 %s115, 1
      %p119 = scmp.eq.s32.totalorder %s18, 1
      %p120 = scmp.ne.s32.totalorder %s115, %s117
      %p121 = scmp.eq.s32.totalorder %s18, 0
      %p122 = por %p120, %p121
      %p123 = scmp.ne.s32.totalorder %s115, %s117
      %p124 = scmp.eq.s32.totalorder %s23, 1
      %p125 = por %p123, %p124
      %p126 = scmp.ne.s32.totalorder %s117, %s118
      %p127 = scmp.eq.s32.totalorder %s23, 0
      %p128 = por %p126, %p127
      %p129 = scmp.ne.s32.totalorder %s117, %s118
      %p130 = scmp.eq.s32.totalorder %s24, 1
      %p131 = por %p129, %p130
      %p133 = scmp.ne.s32.totalorder %s118, %s132
      %p134 = scmp.eq.s32.totalorder %s24, 0
      %p135 = por %p133, %p134
      %s136 = ssub.s32 %s18, %s25
      %p137 = scmp.eq.s32.totalorder %s136, 0
      %s139 = sadd.s32 %s138, 1
      %s140 = scalar_select %p137, %s138, %s139
      %p143 = pneg %p137
      %p144 = scmp.eq.s32.totalorder %s18, 1
      %p145 = por %p143, %p144
      %p146 = scmp.ne.s32.totalorder %s138, %s141
      %p147 = scmp.eq.s32.totalorder %s18, 0
      %p148 = por %p146, %p147
      %p149 = scmp.ne.s32.totalorder %s138, %s141
      %p150 = scmp.eq.s32.totalorder %s23, 1
      %p151 = por %p149, %p150
      %p152 = scmp.ne.s32.totalorder %s141, %s142
      %p153 = scmp.eq.s32.totalorder %s23, 0
      %p154 = por %p152, %p153
      %p155 = scmp.ne.s32.totalorder %s141, %s142
      %p156 = scmp.eq.s32.totalorder %s24, 1
      %p157 = por %p155, %p156
      %p159 = scmp.ne.s32.totalorder %s142, %s158
      %p160 = scmp.eq.s32.totalorder %s24, 0
      %p161 = por %p159, %p160
      %p162 = scmp.le.s32.totalorder 1, %s18
      %p163 = scmp.lt.s32.totalorder %s18, 3
      %p164 = pnand %p162, %p163
      %p165 = pneg %p164
      // Predicated region
      $region9: #{tpu_custom_call.1} parent=5 // pred_check
        _
      $region10: #{tpu_custom_call.1} parent=5 // pred_check_branch
        %167 = sbr.rel (%p164) target = $region12
      $region11: #{tpu_custom_call.1} parent=5 // pred_region
        %s168 = ssub.s32 %s18, 1
        // Predicated region
        $region13: #{tpu_custom_call.1} parent=11 // pred_check
          %p169 = pneg %p65
        $region14: #{tpu_custom_call.1} parent=11 // pred_check_branch
          %171 = sbr.rel (%p169) target = $region16
        $region15: #{tpu_custom_call.1} parent=11 // pred_region
          %s173 = ssub.s32 8192, 8192
          %174 = vsyncadd [#allocation6], %s173
          %s175 = sshll.u32 [#allocation5], 4
          %s176 = int_to_ptr.vmem [resolvable:$true] %s175
          %181 = dma.hbm_to_vmem [thread:$0]  %s1, 8192, %s176, [#allocation6], 64, 64, 4
        $region16: #{tpu_custom_call.1} parent=11 // pred_fallthru
          _
        // Predicated region
        $region17: #{tpu_custom_call.1} parent=11 // pred_check
          %p182 = pneg %p86
        $region18: #{tpu_custom_call.1} parent=11 // pred_check_branch
          %184 = sbr.rel (%p182) target = $region20
        $region19: #{tpu_custom_call.1} parent=11 // pred_region
          _
        $region20: #{tpu_custom_call.1} parent=11 // pred_fallthru
          _
        // Predicated region
        $region21: #{tpu_custom_call.1} parent=11 // pred_check
          %p185 = pneg %p107
        $region22: #{tpu_custom_call.1} parent=11 // pred_check_branch
          %187 = sbr.rel (%p185) target = $region24
        $region23: #{tpu_custom_call.1} parent=11 // pred_region
          %s189 = ssub.s32 1024, 1024
          %190 = vsyncadd [#allocation6], %s189
          %s191 = sshll.u32 [#allocation7], 4
          %s192 = int_to_ptr.vmem [resolvable:$true] %s191
          %197 = dma.hbm_to_vmem [thread:$0]  %s3, 1024, %s192, [#allocation6], 64, 64, 4
        $region24: #{tpu_custom_call.1} parent=11 // pred_fallthru
          _
        // Predicated region
        $region25: #{tpu_custom_call.1} parent=11 // pred_check
          %p198 = pneg %p128
        $region26: #{tpu_custom_call.1} parent=11 // pred_check_branch
          %200 = sbr.rel (%p198) target = $region28
        $region27: #{tpu_custom_call.1} parent=11 // pred_region
          _
        $region28: #{tpu_custom_call.1} parent=11 // pred_fallthru
          _
      $region12: #{tpu_custom_call.1} parent=5 // pred_fallthru
        _
      %p201 = scmp.lt.s32.totalorder %s18, 2
      // Predicated region
      $region29: #{tpu_custom_call.1} parent=5 // pred_check
        %p202 = pneg %p201
      $region30: #{tpu_custom_call.1} parent=5 // pred_check_branch
        %204 = sbr.rel (%p202) target = $region32
      $region31: #{tpu_custom_call.1} parent=5 // pred_region
        // Predicated region
        $region33: #{tpu_custom_call.1} parent=31 // pred_check
          %p205 = pneg %p38
        $region34: #{tpu_custom_call.1} parent=31 // pred_check_branch
          %207 = sbr.rel (%p205) target = $region36
        $region35: #{tpu_custom_call.1} parent=31 // pred_region
          %s208 = sand.u32 %s28, 1
          %s209 = scalar_lea.sflag [#allocation3], %s208
          %s210 = sand.u32 %s28, 1
          %s211 = smul.addr %s210, 64
          %s212 = scalar_lea.vmem [#allocation2], %s211
          %s213 = smul.u32 2, %s18
          %s215 = ssub.s32 1024, 1024
          %216 = vsyncadd %s209, %s215
          %s217 = smul.addr %s213, 8
          %s218 = smul.addr %s217, 64
          %s219 = scalar_lea.hbm %s0, %s218
          %s220 = sshll.u32 %s212, 4
          %s221 = int_to_ptr.vmem [resolvable:$true] %s220
          %226 = dma.hbm_to_vmem [thread:$0]  %s219, 1024, %s221, %s209, 512, 512, 32
        $region36: #{tpu_custom_call.1} parent=31 // pred_fallthru
          _
      $region32: #{tpu_custom_call.1} parent=5 // pred_fallthru
        _
      %p227 = scmp.le.s32.totalorder 1, %s18
      %p228 = scmp.lt.s32.totalorder %s18, 3
      %p229 = pnand %p227, %p228
      %p230 = pneg %p229
      // Predicated region
      $region37: #{tpu_custom_call.1} parent=5 // pred_check
        _
      $region38: #{tpu_custom_call.1} parent=5 // pred_check_branch
        %232 = sbr.rel (%p229) target = $region40
      $region39: #{tpu_custom_call.1} parent=5 // pred_region
        %s233 = ssub.s32 %s18, 1
        %s234 = sand.u32 %s31, 1
        %s235 = scalar_lea.sflag [#allocation3], %s234
        %s236 = sand.u32 %s31, 1
        %s237 = smul.addr %s236, 64
        %s238 = scalar_lea.vmem [#allocation2], %s237
        // Predicated region
        $region41: #{tpu_custom_call.1} parent=39 // pred_check
          %p239 = pneg %p44
        $region42: #{tpu_custom_call.1} parent=39 // pred_check_branch
          %241 = sbr.rel (%p239) target = $region44
        $region43: #{tpu_custom_call.1} parent=39 // pred_region
          %242 = dma.done %s235, 1024
        $region44: #{tpu_custom_call.1} parent=39 // pred_fallthru
          _
        // Predicated region
        $region45: #{tpu_custom_call.1} parent=39 // pred_check
          %p243 = pneg %p65
        $region46: #{tpu_custom_call.1} parent=39 // pred_check_branch
          %245 = sbr.rel (%p243) target = $region48
        $region47: #{tpu_custom_call.1} parent=39 // pred_region
          %246 = dma.done [#allocation6], 8192
        $region48: #{tpu_custom_call.1} parent=39 // pred_fallthru
          _
        // Predicated region
        $region49: #{tpu_custom_call.1} parent=39 // pred_check
          %p247 = pneg %p107
        $region50: #{tpu_custom_call.1} parent=39 // pred_check_branch
          %249 = sbr.rel (%p247) target = $region52
        $region51: #{tpu_custom_call.1} parent=39 // pred_region
          %250 = dma.done [#allocation6], 1024
        $region52: #{tpu_custom_call.1} parent=39 // pred_fallthru
          _
        %s251 = sand.u32 %s31, 1
        %s252 = scalar_lea.sflag [#allocation3], %s251
        %s253 = sand.u32 %s31, 1
        %s254 = smul.addr %s253, 64
        %s255 = scalar_lea.vmem [#allocation2], %s254
        %p256 = pneg %p44
        %p257 = pneg %p41
        %p258 = pneg %p65
        %p259 = pneg %p62
        %p260 = pneg %p86
        %p261 = pneg %p83
        %p262 = pneg %p107
        %p263 = pneg %p104
        %p264 = pneg %p128
        %p265 = pneg %p125
        %p266 = pneg %p154
        %p267 = pneg %p151
        %s268 = sand.u32 %s141, 1
        %s269 = scalar_lea.sflag [#allocation4], %s268
        %s270 = sand.u32 %s141, 1
        %s271 = smul.addr %s270, 16
        %s272 = scalar_lea.vmem [#allocation8], %s271
        %s273 = smul.u32 2, %s23
        %s274 = smul.u32 2, %s23
        %v276 = vld [vmem:[%s238] sm:$0xff]
        %v277 = vld [vmem:[%s238 + $0x8] sm:$0xff]
        %v278 = vld [vmem:[%s238 + $0x10] sm:$0xff]
        %v279 = vld [vmem:[%s238 + $0x18] sm:$0xff]
        %v280 = vld [vmem:[%s238 + $0x20] sm:$0xff]
        %v281 = vld [vmem:[%s238 + $0x28] sm:$0xff]
        %v282 = vld [vmem:[%s238 + $0x30] sm:$0xff]
        %v283 = vld [vmem:[%s238 + $0x38] sm:$0xff]
        %v284 = vld [vmem:[#allocation5] sm:$0xf]
        %v285 = vld [vmem:[#allocation5 + $0x4] sm:$0xf]
        %v286 = vld [vmem:[#allocation5 + $0x8] sm:$0xf]
        %v287 = vld [vmem:[#allocation5 + $0xc] sm:$0xf]
        %v288 = vld [vmem:[#allocation5 + $0x10] sm:$0xf]
        %v289 = vld [vmem:[#allocation5 + $0x14] sm:$0xf]
        %v290 = vld [vmem:[#allocation5 + $0x18] sm:$0xf]
        %v291 = vld [vmem:[#allocation5 + $0x1c] sm:$0xf]
        %v292 = vld [vmem:[#allocation5 + $0x20] sm:$0xf]
        %v293 = vld [vmem:[#allocation5 + $0x24] sm:$0xf]
        %v294 = vld [vmem:[#allocation5 + $0x28] sm:$0xf]
        %v295 = vld [vmem:[#allocation5 + $0x2c] sm:$0xf]
        %v296 = vld [vmem:[#allocation5 + $0x30] sm:$0xf]
        %v297 = vld [vmem:[#allocation5 + $0x34] sm:$0xf]
        %v298 = vld [vmem:[#allocation5 + $0x38] sm:$0xf]
        %v299 = vld [vmem:[#allocation5 + $0x3c] sm:$0xf]
        %v300 = vld [vmem:[#allocation5 + $0x40] sm:$0xf]
        %v301 = vld [vmem:[#allocation5 + $0x44] sm:$0xf]
        %v302 = vld [vmem:[#allocation5 + $0x48] sm:$0xf]
        %v303 = vld [vmem:[#allocation5 + $0x4c] sm:$0xf]
        %v304 = vld [vmem:[#allocation5 + $0x50] sm:$0xf]
        %v305 = vld [vmem:[#allocation5 + $0x54] sm:$0xf]
        %v306 = vld [vmem:[#allocation5 + $0x58] sm:$0xf]
        %v307 = vld [vmem:[#allocation5 + $0x5c] sm:$0xf]
        %v308 = vld [vmem:[#allocation5 + $0x60] sm:$0xf]
        %v309 = vld [vmem:[#allocation5 + $0x64] sm:$0xf]
        %v310 = vld [vmem:[#allocation5 + $0x68] sm:$0xf]
        %v311 = vld [vmem:[#allocation5 + $0x6c] sm:$0xf]
        %v312 = vld [vmem:[#allocation5 + $0x70] sm:$0xf]
        %v313 = vld [vmem:[#allocation5 + $0x74] sm:$0xf]
        %v314 = vld [vmem:[#allocation5 + $0x78] sm:$0xf]
        %v315 = vld [vmem:[#allocation5 + $0x7c] sm:$0xf]
        %v316 = vld [vmem:[#allocation5 + $0x80] sm:$0xf]
        %v317 = vld [vmem:[#allocation5 + $0x84] sm:$0xf]
        %v318 = vld [vmem:[#allocation5 + $0x88] sm:$0xf]
        %v319 = vld [vmem:[#allocation5 + $0x8c] sm:$0xf]
        %v320 = vld [vmem:[#allocation5 + $0x90] sm:$0xf]
        %v321 = vld [vmem:[#allocation5 + $0x94] sm:$0xf]
        %v322 = vld [vmem:[#allocation5 + $0x98] sm:$0xf]
        %v323 = vld [vmem:[#allocation5 + $0x9c] sm:$0xf]
        %v324 = vld [vmem:[#allocation5 + $0xa0] sm:$0xf]
        %v325 = vld [vmem:[#allocation5 + $0xa4] sm:$0xf]
        %v326 = vld [vmem:[#allocation5 + $0xa8] sm:$0xf]
        %v327 = vld [vmem:[#allocation5 + $0xac] sm:$0xf]
        %v328 = vld [vmem:[#allocation5 + $0xb0] sm:$0xf]
        %v329 = vld [vmem:[#allocation5 + $0xb4] sm:$0xf]
        %v330 = vld [vmem:[#allocation5 + $0xb8] sm:$0xf]
        %v331 = vld [vmem:[#allocation5 + $0xbc] sm:$0xf]
        %v332 = vld [vmem:[#allocation5 + $0xc0] sm:$0xf]
        %v333 = vld [vmem:[#allocation5 + $0xc4] sm:$0xf]
        %v334 = vld [vmem:[#allocation5 + $0xc8] sm:$0xf]
        %v335 = vld [vmem:[#allocation5 + $0xcc] sm:$0xf]
        %v336 = vld [vmem:[#allocation5 + $0xd0] sm:$0xf]
        %v337 = vld [vmem:[#allocation5 + $0xd4] sm:$0xf]
        %v338 = vld [vmem:[#allocation5 + $0xd8] sm:$0xf]
        %v339 = vld [vmem:[#allocation5 + $0xdc] sm:$0xf]
        %v340 = vld [vmem:[#allocation5 + $0xe0] sm:$0xf]
        %v341 = vld [vmem:[#allocation5 + $0xe4] sm:$0xf]
        %v342 = vld [vmem:[#allocation5 + $0xe8] sm:$0xf]
        %v343 = vld [vmem:[#allocation5 + $0xec] sm:$0xf]
        %v344 = vld [vmem:[#allocation5 + $0xf0] sm:$0xf]
        %v345 = vld [vmem:[#allocation5 + $0xf4] sm:$0xf]
        %v346 = vld [vmem:[#allocation5 + $0xf8] sm:$0xf]
        %v347 = vld [vmem:[#allocation5 + $0xfc] sm:$0xf]
        %v348 = vld [vmem:[#allocation5 + $0x100] sm:$0xf]
        %v349 = vld [vmem:[#allocation5 + $0x104] sm:$0xf]
        %v350 = vld [vmem:[#allocation5 + $0x108] sm:$0xf]
        %v351 = vld [vmem:[#allocation5 + $0x10c] sm:$0xf]
        %v352 = vld [vmem:[#allocation5 + $0x110] sm:$0xf]
        %v353 = vld [vmem:[#allocation5 + $0x114] sm:$0xf]
        %v354 = vld [vmem:[#allocation5 + $0x118] sm:$0xf]
        %v355 = vld [vmem:[#allocation5 + $0x11c] sm:$0xf]
        %v356 = vld [vmem:[#allocation5 + $0x120] sm:$0xf]
        %v357 = vld [vmem:[#allocation5 + $0x124] sm:$0xf]
        %v358 = vld [vmem:[#allocation5 + $0x128] sm:$0xf]
        %v359 = vld [vmem:[#allocation5 + $0x12c] sm:$0xf]
        %v360 = vld [vmem:[#allocation5 + $0x130] sm:$0xf]
        %v361 = vld [vmem:[#allocation5 + $0x134] sm:$0xf]
        %v362 = vld [vmem:[#allocation5 + $0x138] sm:$0xf]
        %v363 = vld [vmem:[#allocation5 + $0x13c] sm:$0xf]
        %v364 = vld [vmem:[#allocation5 + $0x140] sm:$0xf]
        %v365 = vld [vmem:[#allocation5 + $0x144] sm:$0xf]
        %v366 = vld [vmem:[#allocation5 + $0x148] sm:$0xf]
        %v367 = vld [vmem:[#allocation5 + $0x14c] sm:$0xf]
        %v368 = vld [vmem:[#allocation5 + $0x150] sm:$0xf]
        %v369 = vld [vmem:[#allocation5 + $0x154] sm:$0xf]
        %v370 = vld [vmem:[#allocation5 + $0x158] sm:$0xf]
        %v371 = vld [vmem:[#allocation5 + $0x15c] sm:$0xf]
        %v372 = vld [vmem:[#allocation5 + $0x160] sm:$0xf]
        %v373 = vld [vmem:[#allocation5 + $0x164] sm:$0xf]
        %v374 = vld [vmem:[#allocation5 + $0x168] sm:$0xf]
        %v375 = vld [vmem:[#allocation5 + $0x16c] sm:$0xf]
        %v376 = vld [vmem:[#allocation5 + $0x170] sm:$0xf]
        %v377 = vld [vmem:[#allocation5 + $0x174] sm:$0xf]
        %v378 = vld [vmem:[#allocation5 + $0x178] sm:$0xf]
        %v379 = vld [vmem:[#allocation5 + $0x17c] sm:$0xf]
        %v380 = vld [vmem:[#allocation5 + $0x180] sm:$0xf]
        %v381 = vld [vmem:[#allocation5 + $0x184] sm:$0xf]
        %v382 = vld [vmem:[#allocation5 + $0x188] sm:$0xf]
        %v383 = vld [vmem:[#allocation5 + $0x18c] sm:$0xf]
        %v384 = vld [vmem:[#allocation5 + $0x190] sm:$0xf]
        %v385 = vld [vmem:[#allocation5 + $0x194] sm:$0xf]
        %v386 = vld [vmem:[#allocation5 + $0x198] sm:$0xf]
        %v387 = vld [vmem:[#allocation5 + $0x19c] sm:$0xf]
        %v388 = vld [vmem:[#allocation5 + $0x1a0] sm:$0xf]
        %v389 = vld [vmem:[#allocation5 + $0x1a4] sm:$0xf]
        %v390 = vld [vmem:[#allocation5 + $0x1a8] sm:$0xf]
        %v391 = vld [vmem:[#allocation5 + $0x1ac] sm:$0xf]
        %v392 = vld [vmem:[#allocation5 + $0x1b0] sm:$0xf]
        %v393 = vld [vmem:[#allocation5 + $0x1b4] sm:$0xf]
        %v394 = vld [vmem:[#allocation5 + $0x1b8] sm:$0xf]
        %v395 = vld [vmem:[#allocation5 + $0x1bc] sm:$0xf]
        %v396 = vld [vmem:[#allocation5 + $0x1c0] sm:$0xf]
        %v397 = vld [vmem:[#allocation5 + $0x1c4] sm:$0xf]
        %v398 = vld [vmem:[#allocation5 + $0x1c8] sm:$0xf]
        %v399 = vld [vmem:[#allocation5 + $0x1cc] sm:$0xf]
        %v400 = vld [vmem:[#allocation5 + $0x1d0] sm:$0xf]
        %v401 = vld [vmem:[#allocation5 + $0x1d4] sm:$0xf]
        %v402 = vld [vmem:[#allocation5 + $0x1d8] sm:$0xf]
        %v403 = vld [vmem:[#allocation5 + $0x1dc] sm:$0xf]
        %v404 = vld [vmem:[#allocation5 + $0x1e0] sm:$0xf]
        %v405 = vld [vmem:[#allocation5 + $0x1e4] sm:$0xf]
        %v406 = vld [vmem:[#allocation5 + $0x1e8] sm:$0xf]
        %v407 = vld [vmem:[#allocation5 + $0x1ec] sm:$0xf]
        %v408 = vld [vmem:[#allocation5 + $0x1f0] sm:$0xf]
        %v409 = vld [vmem:[#allocation5 + $0x1f4] sm:$0xf]
        %v410 = vld [vmem:[#allocation5 + $0x1f8] sm:$0xf]
        %v411 = vld [vmem:[#allocation5 + $0x1fc] sm:$0xf]
        %v412 = vld [vmem:[%s2] sm:$0x1]
        %v414 = vlaneseq
        %v415 = vshrl.u32 %v414, 7
        %v416 = vsub.s32 0, %v415
        %v417 = vrot.slane %v412, %v416
        %v427 = vunpack.c.l.b16 %v276
        %v428 = vunpack.c.h.b16 %v276
        %v429 = vunpack.c.l.b16 %v277
        %v430 = vunpack.c.h.b16 %v277
        %v431 = vunpack.c.l.b16 %v278
        %v432 = vunpack.c.h.b16 %v278
        %v433 = vunpack.c.l.b16 %v279
        %v434 = vunpack.c.h.b16 %v279
        %v435 = vunpack.c.l.b16 %v280
        %v436 = vunpack.c.h.b16 %v280
        %v437 = vunpack.c.l.b16 %v281
        %v438 = vunpack.c.h.b16 %v281
        %v439 = vunpack.c.l.b16 %v282
        %v440 = vunpack.c.h.b16 %v282
        %v441 = vunpack.c.l.b16 %v283
        %v442 = vunpack.c.h.b16 %v283
        %v443 = vpack.c.b16 %v435, %v427
        %v444 = vpack.c.b16 %v436, %v428
        %v445 = vpack.c.b16 %v437, %v429
        %v446 = vpack.c.b16 %v438, %v430
        %v447 = vpack.c.b16 %v439, %v431
        %v448 = vpack.c.b16 %v440, %v432
        %v449 = vpack.c.b16 %v441, %v433
        %v450 = vpack.c.b16 %v442, %v434
        %v587 = vunpack.c.l.b16 %v284
        %v588 = vunpack.c.l.b16 %v285
        %v589 = vunpack.c.l.b16 %v286
        %v590 = vunpack.c.l.b16 %v287
        %v591 = vunpack.c.l.b16 %v288
        %v592 = vunpack.c.l.b16 %v289
        %v593 = vunpack.c.l.b16 %v290
        %v594 = vunpack.c.l.b16 %v291
        %v595 = vunpack.c.l.b16 %v292
        %v596 = vunpack.c.l.b16 %v293
        %v597 = vunpack.c.l.b16 %v294
        %v598 = vunpack.c.l.b16 %v295
        %v599 = vunpack.c.l.b16 %v296
        %v600 = vunpack.c.l.b16 %v297
        %v601 = vunpack.c.l.b16 %v298
        %v602 = vunpack.c.l.b16 %v299
        %v603 = vunpack.c.l.b16 %v300
        %v604 = vunpack.c.l.b16 %v301
        %v605 = vunpack.c.l.b16 %v302
        %v606 = vunpack.c.l.b16 %v303
        %v607 = vunpack.c.l.b16 %v304
        %v608 = vunpack.c.l.b16 %v305
        %v609 = vunpack.c.l.b16 %v306
        %v610 = vunpack.c.l.b16 %v307
        %v611 = vunpack.c.l.b16 %v308
        %v612 = vunpack.c.l.b16 %v309
        %v613 = vunpack.c.l.b16 %v310
        %v614 = vunpack.c.l.b16 %v311
        %v615 = vunpack.c.l.b16 %v312
        %v616 = vunpack.c.l.b16 %v313
        %v617 = vunpack.c.l.b16 %v314
        %v618 = vunpack.c.l.b16 %v315
        %v619 = vunpack.c.l.b16 %v316
        %v620 = vunpack.c.l.b16 %v317
        %v621 = vunpack.c.l.b16 %v318
        %v622 = vunpack.c.l.b16 %v319
        %v623 = vunpack.c.l.b16 %v320
        %v624 = vunpack.c.l.b16 %v321
        %v625 = vunpack.c.l.b16 %v322
        %v626 = vunpack.c.l.b16 %v323
        %v627 = vunpack.c.l.b16 %v324
        %v628 = vunpack.c.l.b16 %v325
        %v629 = vunpack.c.l.b16 %v326
        %v630 = vunpack.c.l.b16 %v327
        %v631 = vunpack.c.l.b16 %v328
        %v632 = vunpack.c.l.b16 %v329
        %v633 = vunpack.c.l.b16 %v330
        %v634 = vunpack.c.l.b16 %v331
        %v635 = vunpack.c.l.b16 %v332
        %v636 = vunpack.c.l.b16 %v333
        %v637 = vunpack.c.l.b16 %v334
        %v638 = vunpack.c.l.b16 %v335
        %v639 = vunpack.c.l.b16 %v336
        %v640 = vunpack.c.l.b16 %v337
        %v641 = vunpack.c.l.b16 %v338
        %v642 = vunpack.c.l.b16 %v339
        %v643 = vunpack.c.l.b16 %v340
        %v644 = vunpack.c.l.b16 %v341
        %v645 = vunpack.c.l.b16 %v342
        %v646 = vunpack.c.l.b16 %v343
        %v647 = vunpack.c.l.b16 %v344
        %v648 = vunpack.c.l.b16 %v345
        %v649 = vunpack.c.l.b16 %v346
        %v650 = vunpack.c.l.b16 %v347
        %v651 = vunpack.c.l.b16 %v348
        %v652 = vunpack.c.l.b16 %v349
        %v653 = vunpack.c.l.b16 %v350
        %v654 = vunpack.c.l.b16 %v351
        %v655 = vunpack.c.l.b16 %v352
        %v656 = vunpack.c.l.b16 %v353
        %v657 = vunpack.c.l.b16 %v354
        %v658 = vunpack.c.l.b16 %v355
        %v659 = vunpack.c.l.b16 %v356
        %v660 = vunpack.c.l.b16 %v357
        %v661 = vunpack.c.l.b16 %v358
        %v662 = vunpack.c.l.b16 %v359
        %v663 = vunpack.c.l.b16 %v360
        %v664 = vunpack.c.l.b16 %v361
        %v665 = vunpack.c.l.b16 %v362
        %v666 = vunpack.c.l.b16 %v363
        %v667 = vunpack.c.l.b16 %v364
        %v668 = vunpack.c.l.b16 %v365
        %v669 = vunpack.c.l.b16 %v366
        %v670 = vunpack.c.l.b16 %v367
        %v671 = vunpack.c.l.b16 %v368
        %v672 = vunpack.c.l.b16 %v369
        %v673 = vunpack.c.l.b16 %v370
        %v674 = vunpack.c.l.b16 %v371
        %v675 = vunpack.c.l.b16 %v372
        %v676 = vunpack.c.l.b16 %v373
        %v677 = vunpack.c.l.b16 %v374
        %v678 = vunpack.c.l.b16 %v375
        %v679 = vunpack.c.l.b16 %v376
        %v680 = vunpack.c.l.b16 %v377
        %v681 = vunpack.c.l.b16 %v378
        %v682 = vunpack.c.l.b16 %v379
        %v683 = vunpack.c.l.b16 %v380
        %v684 = vunpack.c.l.b16 %v381
        %v685 = vunpack.c.l.b16 %v382
        %v686 = vunpack.c.l.b16 %v383
        %v687 = vunpack.c.l.b16 %v384
        %v688 = vunpack.c.l.b16 %v385
        %v689 = vunpack.c.l.b16 %v386
        %v690 = vunpack.c.l.b16 %v387
        %v691 = vunpack.c.l.b16 %v388
        %v692 = vunpack.c.l.b16 %v389
        %v693 = vunpack.c.l.b16 %v390
        %v694 = vunpack.c.l.b16 %v391
        %v695 = vunpack.c.l.b16 %v392
        %v696 = vunpack.c.l.b16 %v393
        %v697 = vunpack.c.l.b16 %v394
        %v698 = vunpack.c.l.b16 %v395
        %v699 = vunpack.c.l.b16 %v396
        %v700 = vunpack.c.l.b16 %v397
        %v701 = vunpack.c.l.b16 %v398
        %v702 = vunpack.c.l.b16 %v399
        %v703 = vunpack.c.l.b16 %v400
        %v704 = vunpack.c.l.b16 %v401
        %v705 = vunpack.c.l.b16 %v402
        %v706 = vunpack.c.l.b16 %v403
        %v707 = vunpack.c.l.b16 %v404
        %v708 = vunpack.c.l.b16 %v405
        %v709 = vunpack.c.l.b16 %v406
        %v710 = vunpack.c.l.b16 %v407
        %v711 = vunpack.c.l.b16 %v408
        %v712 = vunpack.c.l.b16 %v409
        %v713 = vunpack.c.l.b16 %v410
        %v714 = vunpack.c.l.b16 %v411
        %v715 = vpack.c.b16 %v588, %v587
        %v716 = vpack.c.b16 %v590, %v589
        %v717 = vpack.c.b16 %v592, %v591
        %v718 = vpack.c.b16 %v594, %v593
        %v719 = vpack.c.b16 %v596, %v595
        %v720 = vpack.c.b16 %v598, %v597
        %v721 = vpack.c.b16 %v600, %v599
        %v722 = vpack.c.b16 %v602, %v601
        %v723 = vpack.c.b16 %v604, %v603
        %v724 = vpack.c.b16 %v606, %v605
        %v725 = vpack.c.b16 %v608, %v607
        %v726 = vpack.c.b16 %v610, %v609
        %v727 = vpack.c.b16 %v612, %v611
        %v728 = vpack.c.b16 %v614, %v613
        %v729 = vpack.c.b16 %v616, %v615
        %v730 = vpack.c.b16 %v618, %v617
        %v731 = vpack.c.b16 %v620, %v619
        %v732 = vpack.c.b16 %v622, %v621
        %v733 = vpack.c.b16 %v624, %v623
        %v734 = vpack.c.b16 %v626, %v625
        %v735 = vpack.c.b16 %v628, %v627
        %v736 = vpack.c.b16 %v630, %v629
        %v737 = vpack.c.b16 %v632, %v631
        %v738 = vpack.c.b16 %v634, %v633
        %v739 = vpack.c.b16 %v636, %v635
        %v740 = vpack.c.b16 %v638, %v637
        %v741 = vpack.c.b16 %v640, %v639
        %v742 = vpack.c.b16 %v642, %v641
        %v743 = vpack.c.b16 %v644, %v643
        %v744 = vpack.c.b16 %v646, %v645
        %v745 = vpack.c.b16 %v648, %v647
        %v746 = vpack.c.b16 %v650, %v649
        %v747 = vpack.c.b16 %v652, %v651
        %v748 = vpack.c.b16 %v654, %v653
        %v749 = vpack.c.b16 %v656, %v655
        %v750 = vpack.c.b16 %v658, %v657
        %v751 = vpack.c.b16 %v660, %v659
        %v752 = vpack.c.b16 %v662, %v661
        %v753 = vpack.c.b16 %v664, %v663
        %v754 = vpack.c.b16 %v666, %v665
        %v755 = vpack.c.b16 %v668, %v667
        %v756 = vpack.c.b16 %v670, %v669
        %v757 = vpack.c.b16 %v672, %v671
        %v758 = vpack.c.b16 %v674, %v673
        %v759 = vpack.c.b16 %v676, %v675
        %v760 = vpack.c.b16 %v678, %v677
        %v761 = vpack.c.b16 %v680, %v679
        %v762 = vpack.c.b16 %v682, %v681
        %v763 = vpack.c.b16 %v684, %v683
        %v764 = vpack.c.b16 %v686, %v685
        %v765 = vpack.c.b16 %v688, %v687
        %v766 = vpack.c.b16 %v690, %v689
        %v767 = vpack.c.b16 %v692, %v691
        %v768 = vpack.c.b16 %v694, %v693
        %v769 = vpack.c.b16 %v696, %v695
        %v770 = vpack.c.b16 %v698, %v697
        %v771 = vpack.c.b16 %v700, %v699
        %v772 = vpack.c.b16 %v702, %v701
        %v773 = vpack.c.b16 %v704, %v703
        %v774 = vpack.c.b16 %v706, %v705
        %v775 = vpack.c.b16 %v708, %v707
        %v776 = vpack.c.b16 %v710, %v709
        %v777 = vpack.c.b16 %v712, %v711
        %v778 = vpack.c.b16 %v714, %v713
        %843 = vmatprep.subr.bf16.mxu0 0
        %844 = vmatpush1.bf16.msra.mxu0 %v722
        %845 = vmatprep.subr.bf16.mxu0 0
        %846 = vmatpush1.bf16.msra.mxu0 %v721
        %847 = vmatprep.subr.bf16.mxu0 0
        %848 = vmatpush1.bf16.msra.mxu0 %v720
        %849 = vmatprep.subr.bf16.mxu0 0
        %850 = vmatpush1.bf16.msra.mxu0 %v719
        %851 = vmatprep.subr.bf16.mxu0 0
        %852 = vmatpush1.bf16.msra.mxu0 %v718
        %853 = vmatprep.subr.bf16.mxu0 0
        %854 = vmatpush1.bf16.msra.mxu0 %v717
        %855 = vmatprep.subr.bf16.mxu0 0
        %856 = vmatpush1.bf16.msra.mxu0 %v716
        %857 = vmatprep.subr.bf16.mxu0 0
        %858 = vmatpush1.bf16.msra.mxu0 %v715
        %859 = vmatprep.subr.bf16.mxu0 0
        %860 = vmatpush2.bf16.msra.mxu0 %v730
        %861 = vmatprep.subr.bf16.mxu0 0
        %862 = vmatpush2.bf16.msra.mxu0 %v729
        %863 = vmatprep.subr.bf16.mxu0 0
        %864 = vmatpush2.bf16.msra.mxu0 %v728
        %865 = vmatprep.subr.bf16.mxu0 0
        %866 = vmatpush2.bf16.msra.mxu0 %v727
        %867 = vmatprep.subr.bf16.mxu0 0
        %868 = vmatpush2.bf16.msra.mxu0 %v726
        %869 = vmatprep.subr.bf16.mxu0 0
        %870 = vmatpush2.bf16.msra.mxu0 %v725
        %871 = vmatprep.subr.bf16.mxu0 0
        %872 = vmatpush2.bf16.msra.mxu0 %v724
        %873 = vmatprep.subr.bf16.mxu0 0
        %874 = vmatpush2.bf16.msra.mxu0 %v723
        %875 = vmatprep.mubr.bf16.mxu0 %v444
        %876 = vmatmul.mubr.bf16.gmra.mxu0 %v443
        %v877 = vpop.f32.mrf.mxu0
        %v878 = vadd.f32 %v417, %v877
        %v879 = vpop.f32.mrf.mxu0
        %v880 = vpop.f32.mrf.mxu0
        %v881 = vadd.f32 %v417, %v880
        %v882 = vpop.f32.mrf.mxu0
        %883 = vdwg.mxu0
        %884 = vmatprep.subr.bf16.mxu0 0
        %885 = vmatpush1.bf16.msra.mxu0 %v738
        %886 = vmatprep.subr.bf16.mxu0 0
        %887 = vmatpush1.bf16.msra.mxu0 %v737
        %888 = vmatprep.subr.bf16.mxu0 0
        %889 = vmatpush1.bf16.msra.mxu0 %v736
        %890 = vmatprep.subr.bf16.mxu0 0
        %891 = vmatpush1.bf16.msra.mxu0 %v735
        %892 = vmatprep.subr.bf16.mxu0 0
        %893 = vmatpush1.bf16.msra.mxu0 %v734
        %894 = vmatprep.subr.bf16.mxu0 0
        %895 = vmatpush1.bf16.msra.mxu0 %v733
        %896 = vmatprep.subr.bf16.mxu0 0
        %897 = vmatpush1.bf16.msra.mxu0 %v732
        %898 = vmatprep.subr.bf16.mxu0 0
        %899 = vmatpush1.bf16.msra.mxu0 %v731
        %900 = vmatprep.subr.bf16.mxu0 0
        %901 = vmatpush2.bf16.msra.mxu0 %v746
        %902 = vmatprep.subr.bf16.mxu0 0
        %903 = vmatpush2.bf16.msra.mxu0 %v745
        %904 = vmatprep.subr.bf16.mxu0 0
        %905 = vmatpush2.bf16.msra.mxu0 %v744
        %906 = vmatprep.subr.bf16.mxu0 0
        %907 = vmatpush2.bf16.msra.mxu0 %v743
        %908 = vmatprep.subr.bf16.mxu0 0
        %909 = vmatpush2.bf16.msra.mxu0 %v742
        %910 = vmatprep.subr.bf16.mxu0 0
        %911 = vmatpush2.bf16.msra.mxu0 %v741
        %912 = vmatprep.subr.bf16.mxu0 0
        %913 = vmatpush2.bf16.msra.mxu0 %v740
        %914 = vmatprep.subr.bf16.mxu0 0
        %915 = vmatpush2.bf16.msra.mxu0 %v739
        %916 = vmatprep.mubr.bf16.mxu0 %v446
        %917 = vmatmul.mubr.bf16.gmra.mxu0 %v445
        %v918 = vpop.f32.mrf.mxu0
        %v919 = vadd.f32 %v878, %v918
        %v920 = vpop.f32.mrf.mxu0
        %v921 = vpop.f32.mrf.mxu0
        %v922 = vadd.f32 %v881, %v921
        %v923 = vpop.f32.mrf.mxu0
        %924 = vdwg.mxu0
        %925 = vmatprep.subr.bf16.mxu0 0
        %926 = vmatpush1.bf16.msra.mxu0 %v754
        %927 = vmatprep.subr.bf16.mxu0 0
        %928 = vmatpush1.bf16.msra.mxu0 %v753
        %929 = vmatprep.subr.bf16.mxu0 0
        %930 = vmatpush1.bf16.msra.mxu0 %v752
        %931 = vmatprep.subr.bf16.mxu0 0
        %932 = vmatpush1.bf16.msra.mxu0 %v751
        %933 = vmatprep.subr.bf16.mxu0 0
        %934 = vmatpush1.bf16.msra.mxu0 %v750
        %935 = vmatprep.subr.bf16.mxu0 0
        %936 = vmatpush1.bf16.msra.mxu0 %v749
        %937 = vmatprep.subr.bf16.mxu0 0
        %938 = vmatpush1.bf16.msra.mxu0 %v748
        %939 = vmatprep.subr.bf16.mxu0 0
        %940 = vmatpush1.bf16.msra.mxu0 %v747
        %941 = vmatprep.subr.bf16.mxu0 0
        %942 = vmatpush2.bf16.msra.mxu0 %v762
        %943 = vmatprep.subr.bf16.mxu0 0
        %944 = vmatpush2.bf16.msra.mxu0 %v761
        %945 = vmatprep.subr.bf16.mxu0 0
        %946 = vmatpush2.bf16.msra.mxu0 %v760
        %947 = vmatprep.subr.bf16.mxu0 0
        %948 = vmatpush2.bf16.msra.mxu0 %v759
        %949 = vmatprep.subr.bf16.mxu0 0
        %950 = vmatpush2.bf16.msra.mxu0 %v758
        %951 = vmatprep.subr.bf16.mxu0 0
        %952 = vmatpush2.bf16.msra.mxu0 %v757
        %953 = vmatprep.subr.bf16.mxu0 0
        %954 = vmatpush2.bf16.msra.mxu0 %v756
        %955 = vmatprep.subr.bf16.mxu0 0
        %956 = vmatpush2.bf16.msra.mxu0 %v755
        %957 = vmatprep.mubr.bf16.mxu0 %v448
        %958 = vmatmul.mubr.bf16.gmra.mxu0 %v447
        %v959 = vpop.f32.mrf.mxu0
        %v960 = vadd.f32 %v919, %v959
        %v961 = vpop.f32.mrf.mxu0
        %v962 = vpop.f32.mrf.mxu0
        %v963 = vadd.f32 %v922, %v962
        %v964 = vpop.f32.mrf.mxu0
        %965 = vdwg.mxu0
        %966 = vmatprep.subr.bf16.mxu0 0
        %967 = vmatpush1.bf16.msra.mxu0 %v770
        %968 = vmatprep.subr.bf16.mxu0 0
        %969 = vmatpush1.bf16.msra.mxu0 %v769
        %970 = vmatprep.subr.bf16.mxu0 0
        %971 = vmatpush1.bf16.msra.mxu0 %v768
        %972 = vmatprep.subr.bf16.mxu0 0
        %973 = vmatpush1.bf16.msra.mxu0 %v767
        %974 = vmatprep.subr.bf16.mxu0 0
        %975 = vmatpush1.bf16.msra.mxu0 %v766
        %976 = vmatprep.subr.bf16.mxu0 0
        %977 = vmatpush1.bf16.msra.mxu0 %v765
        %978 = vmatprep.subr.bf16.mxu0 0
        %979 = vmatpush1.bf16.msra.mxu0 %v764
        %980 = vmatprep.subr.bf16.mxu0 0
        %981 = vmatpush1.bf16.msra.mxu0 %v763
        %982 = vmatprep.subr.bf16.mxu0 0
        %983 = vmatpush2.bf16.msra.mxu0 %v778
        %984 = vmatprep.subr.bf16.mxu0 0
        %985 = vmatpush2.bf16.msra.mxu0 %v777
        %986 = vmatprep.subr.bf16.mxu0 0
        %987 = vmatpush2.bf16.msra.mxu0 %v776
        %988 = vmatprep.subr.bf16.mxu0 0
        %989 = vmatpush2.bf16.msra.mxu0 %v775
        %990 = vmatprep.subr.bf16.mxu0 0
        %991 = vmatpush2.bf16.msra.mxu0 %v774
        %992 = vmatprep.subr.bf16.mxu0 0
        %993 = vmatpush2.bf16.msra.mxu0 %v773
        %994 = vmatprep.subr.bf16.mxu0 0
        %995 = vmatpush2.bf16.msra.mxu0 %v772
        %996 = vmatprep.subr.bf16.mxu0 0
        %997 = vmatpush2.bf16.msra.mxu0 %v771
        %998 = vmatprep.mubr.bf16.mxu0 %v450
        %999 = vmatmul.mubr.bf16.gmra.mxu0 %v449
        %v1000 = vpop.f32.mrf.mxu0
        %v1001 = vadd.f32 %v960, %v1000
        %v1002 = vpop.f32.mrf.mxu0
        %v1003 = vpop.f32.mrf.mxu0
        %v1004 = vadd.f32 %v963, %v1003
        %v1005 = vpop.f32.mrf.mxu0
        %1006 = vdwg.mxu0
        %v1007 = vmax.f32 %v1001, 0.0
        %v1008 = vmax.f32 %v1004, 0.0
        %v1009 = vpack.c.bf16 %v1008, %v1007
        %v1010 = vld [vmem:[#allocation7] sm:$0xf]
        %v1011 = vld [vmem:[#allocation7 + $0x4] sm:$0xf]
        %v1012 = vld [vmem:[#allocation7 + $0x8] sm:$0xf]
        %v1013 = vld [vmem:[#allocation7 + $0xc] sm:$0xf]
        %v1014 = vld [vmem:[#allocation7 + $0x10] sm:$0xf]
        %v1015 = vld [vmem:[#allocation7 + $0x14] sm:$0xf]
        %v1016 = vld [vmem:[#allocation7 + $0x18] sm:$0xf]
        %v1017 = vld [vmem:[#allocation7 + $0x1c] sm:$0xf]
        %v1018 = vld [vmem:[#allocation7 + $0x20] sm:$0xf]
        %v1019 = vld [vmem:[#allocation7 + $0x24] sm:$0xf]
        %v1020 = vld [vmem:[#allocation7 + $0x28] sm:$0xf]
        %v1021 = vld [vmem:[#allocation7 + $0x2c] sm:$0xf]
        %v1022 = vld [vmem:[#allocation7 + $0x30] sm:$0xf]
        %v1023 = vld [vmem:[#allocation7 + $0x34] sm:$0xf]
        %v1024 = vld [vmem:[#allocation7 + $0x38] sm:$0xf]
        %v1025 = vld [vmem:[#allocation7 + $0x3c] sm:$0xf]
        %v1026 = vld [vmem:[%s4] sm:$0x1]
        %v1028 = vlaneseq
        %v1029 = vshrl.u32 %v1028, 7
        %v1030 = vsub.s32 0, %v1029
        %v1031 = vrot.slane %v1026, %v1030
        %v1049 = vunpack.c.l.b16 %v1010
        %v1050 = vunpack.c.l.b16 %v1011
        %v1051 = vunpack.c.l.b16 %v1012
        %v1052 = vunpack.c.l.b16 %v1013
        %v1053 = vunpack.c.l.b16 %v1014
        %v1054 = vunpack.c.l.b16 %v1015
        %v1055 = vunpack.c.l.b16 %v1016
        %v1056 = vunpack.c.l.b16 %v1017
        %v1057 = vunpack.c.l.b16 %v1018
        %v1058 = vunpack.c.l.b16 %v1019
        %v1059 = vunpack.c.l.b16 %v1020
        %v1060 = vunpack.c.l.b16 %v1021
        %v1061 = vunpack.c.l.b16 %v1022
        %v1062 = vunpack.c.l.b16 %v1023
        %v1063 = vunpack.c.l.b16 %v1024
        %v1064 = vunpack.c.l.b16 %v1025
        %v1065 = vpack.c.b16 %v1050, %v1049
        %v1066 = vpack.c.b16 %v1052, %v1051
        %v1067 = vpack.c.b16 %v1054, %v1053
        %v1068 = vpack.c.b16 %v1056, %v1055
        %v1069 = vpack.c.b16 %v1058, %v1057
        %v1070 = vpack.c.b16 %v1060, %v1059
        %v1071 = vpack.c.b16 %v1062, %v1061
        %v1072 = vpack.c.b16 %v1064, %v1063
        %1081 = vmatprep.subr.bf16.mxu0 0
        %1082 = vmatpush1.bf16.msra.mxu0 %v1072
        %1083 = vmatprep.subr.bf16.mxu0 0
        %1084 = vmatpush1.bf16.msra.mxu0 %v1071
        %1085 = vmatprep.subr.bf16.mxu0 0
        %1086 = vmatpush1.bf16.msra.mxu0 %v1070
        %1087 = vmatprep.subr.bf16.mxu0 0
        %1088 = vmatpush1.bf16.msra.mxu0 %v1069
        %1089 = vmatprep.subr.bf16.mxu0 0
        %1090 = vmatpush1.bf16.msra.mxu0 %v1068
        %1091 = vmatprep.subr.bf16.mxu0 0
        %1092 = vmatpush1.bf16.msra.mxu0 %v1067
        %1093 = vmatprep.subr.bf16.mxu0 0
        %1094 = vmatpush1.bf16.msra.mxu0 %v1066
        %1095 = vmatprep.subr.bf16.mxu0 0
        %1096 = vmatpush1.bf16.msra.mxu0 %v1065
        %1097 = vmatprep.subr.bf16.mxu0 0
        %1098 = vmatpush2.bf16.msra.mxu0 0
        %1099 = vmatprep.subr.bf16.mxu0 0
        %1100 = vmatpush2.bf16.msra.mxu0 0
        %1101 = vmatprep.subr.bf16.mxu0 0
        %1102 = vmatpush2.bf16.msra.mxu0 0
        %1103 = vmatprep.subr.bf16.mxu0 0
        %1104 = vmatpush2.bf16.msra.mxu0 0
        %1105 = vmatprep.subr.bf16.mxu0 0
        %1106 = vmatpush2.bf16.msra.mxu0 0
        %1107 = vmatprep.subr.bf16.mxu0 0
        %1108 = vmatpush2.bf16.msra.mxu0 0
        %1109 = vmatprep.subr.bf16.mxu0 0
        %1110 = vmatpush2.bf16.msra.mxu0 0
        %1111 = vmatprep.subr.bf16.mxu0 0
        %1112 = vmatpush2.bf16.msra.mxu0 0
        %1113 = vmatprep.mubr.bf16.mxu0 0
        %1114 = vmatmul.mubr.bf16.gmra.mxu0 %v1009
        %v1115 = vpop.f32.mrf.mxu0
        %v1116 = vadd.f32 %v1031, %v1115
        %v1117 = vpop.f32.mrf.mxu0
        %v1118 = vpop.f32.mrf.mxu0
        %v1119 = vadd.f32 %v1031, %v1118
        %v1120 = vpop.f32.mrf.mxu0
        %1121 = vdwg.mxu0
        %1122 = vst [vmem:[%s272] sm:$0xff] %v1116
        %1123 = vst [vmem:[%s272 + $0x8] sm:$0xff] %v1119
        %s1124 = sand.u32 %s141, 1
        %s1125 = scalar_lea.sflag [#allocation4], %s1124
        %s1126 = sand.u32 %s141, 1
        %s1127 = smul.addr %s1126, 16
        %s1128 = scalar_lea.vmem [#allocation8], %s1127
        // Predicated region
        $region53: #{tpu_custom_call.1} parent=39 // pred_check
          %p1129 = pneg %p151
        $region54: #{tpu_custom_call.1} parent=39 // pred_check_branch
          %1131 = sbr.rel (%p1129) target = $region56
        $region55: #{tpu_custom_call.1} parent=39 // pred_region
          %s1132 = smul.u32 2, %s23
          %s1134 = ssub.s32 256, 256
          %1135 = vsyncadd %s1125, %s1134
          %s1136 = smul.addr %s1132, 128
          %s1137 = scalar_lea.hbm %s5, %s1136
          %s1138 = sshll.u32 %s1128, 4
          %s1139 = int_to_ptr.vmem [resolvable:$true] %s1138
          %1144 = dma.vmem_to_hbm [thread:$0]  %s1139, 256, %s1137, %s1125, 128, 128, 8
        $region56: #{tpu_custom_call.1} parent=39 // pred_fallthru
          _
      $region40: #{tpu_custom_call.1} parent=5 // pred_fallthru
        _
      %p1145 = scmp.le.s32.totalorder 2, %s18
      // Predicated region
      $region57: #{tpu_custom_call.1} parent=5 // pred_check
        %p1146 = pneg %p1145
      $region58: #{tpu_custom_call.1} parent=5 // pred_check_branch
        %1148 = sbr.rel (%p1146) target = $region60
      $region59: #{tpu_custom_call.1} parent=5 // pred_region
        %s1149 = ssub.s32 %s18, 2
        // Predicated region
        $region61: #{tpu_custom_call.1} parent=59 // pred_check
          %p1150 = pneg %p157
        $region62: #{tpu_custom_call.1} parent=59 // pred_check_branch
          %1152 = sbr.rel (%p1150) target = $region64
        $region63: #{tpu_custom_call.1} parent=59 // pred_region
          %s1153 = sand.u32 %s142, 1
          %s1154 = scalar_lea.sflag [#allocation4], %s1153
          %s1155 = sand.u32 %s142, 1
          %s1156 = smul.addr %s1155, 16
          %s1157 = scalar_lea.vmem [#allocation8], %s1156
          %1158 = dma.done %s1154, 256
        $region64: #{tpu_custom_call.1} parent=59 // pred_fallthru
          _
      $region60: #{tpu_custom_call.1} parent=5 // pred_fallthru
        _
    $region6: #{tpu_custom_call.1} parent=1 // loop_footer
      %s22 = sadd.s32 1, %s18
    $region7: #{tpu_custom_call.1} parent=1 // loop_footer_branch
      %17 = sbr.rel target = $region3
    $region8: #{tpu_custom_call.1} parent=1 // loop_exit
      _
    %1159 = vsyncpa [#allocation3], 1
    %s1160 = scalar_lea.sflag [#allocation3], 1
    %1161 = vsyncpa %s1160, 1
    %1162 = vsyncpa [#allocation6], 1
    %1163 = vsyncpa [#allocation4], 1
    %s1164 = scalar_lea.sflag [#allocation4], 1
    %1165 = vsyncpa %s1164, 1

</llo_original>
